<compile_context>
chip_gen: v7x
topology: tpu7x:2x2x1
jax: 0.10.0
libtpu: 0.0.40
codegen_flags: <defaults>
</compile_context>

<pallas_src>
import functools

import jax
import jax.numpy as jnp
from jax import lax
from jax.experimental import pallas as pl
from jax.experimental.pallas import tpu as pltpu

_LANE = 128
_SUBLANE = 8


def _round_up(x, m):
    return (x + m - 1) // m * m


def _cca_ssg_kernel(x_ref, w1_ref, b1_ref, w2_ref, b2_ref, z_ref,
                    sum_ref, sq_ref, *, n_rows, d_out, tile_n):
    """One (view, row-tile) grid step: encoder MLP tile + streamed batch stats.

    The per-view representation stays resident in the output VMEM block; the
    last row tile finishes with a single (z - mean) * inv_std pass.
    """
    t = pl.program_id(1)
    num_t = pl.num_programs(1)
    d_out_p = z_ref.shape[-1]

    @pl.when(t == 0)
    def _():
        sum_ref[...] = jnp.zeros_like(sum_ref)
        sq_ref[...] = jnp.zeros_like(sq_ref)

    # ---- encoder: Linear -> ReLU -> Linear (bf16 MXU operands, f32 acc) ----
    # x_ref / w1_ref / w2_ref are already bf16 (cast in the wrapper).
    x = x_ref[...]                                              # [TN, Din] bf16
    h = jnp.dot(x, w1_ref[...], preferred_element_type=jnp.float32)
    h = jnp.maximum(h + b1_ref[...], 0.0)                       # [TN, H_p] f32
    rep = jnp.dot(h.astype(jnp.bfloat16), w2_ref[...],
                  preferred_element_type=jnp.float32)
    rep = rep + b2_ref[...]                                     # [TN, Dout_p] f32

    # Stash this tile's representation into the VMEM-resident output block.
    row0 = pl.multiple_of(t * tile_n, tile_n)
    z_ref[pl.ds(row0, tile_n), :] = rep

    # ---- streamed batch statistics (padded rows masked out) ----
    row_ok = (row0 + lax.broadcasted_iota(jnp.int32, (tile_n, 1), 0)) < n_rows
    rep_m = jnp.where(row_ok, rep, 0.0)
    sum_ref[...] += jnp.sum(rep_m, axis=0, keepdims=True)
    sq_ref[...] += jnp.sum(rep_m * rep, axis=0, keepdims=True)  # masked rep^2

    # ---- last row tile: single-pass z-normalization of the whole view ----
    @pl.when(t == num_t - 1)
    def _():
        lane_ok = lax.broadcasted_iota(jnp.int32, (1, d_out_p), 1) < d_out
        mean = sum_ref[...] * (1.0 / float(n_rows))
        # torch.std(dim=0) is Bessel-corrected (N - 1).  NOTE: n_rows == 1
        # divides by zero here; torch likewise yields nan/inf in that case.
        var = (sq_ref[...] - float(n_rows) * mean * mean) / float(n_rows - 1)
        var = jnp.maximum(var, 0.0)            # guard f32 cancellation
        # rsqrt on the EUP; padded lanes zeroed so no inf/NaN ever escapes.
        inv_std = jnp.where(lane_ok, lax.rsqrt(var), 0.0)
        z_ref[...] = (z_ref[...] - mean) * inv_std


def cca_ssg_forward(online_x, target_x, params, *, tile_n=512):
    """Pallas equivalent of CcaSsg.forward: returns (z1, z2)."""
    w1, b1, w2, b2 = params
    n, d_in = online_x.shape
    h_dim = w1.shape[1]
    d_out = w2.shape[1]

    # Hidden / output feature dims lane-padded to 128 (lane-dense MXU outputs
    # and stores).  The streamed x feature dim is NOT padded.
    h_p = _round_up(h_dim, _LANE)
    d_out_p = _round_up(d_out, _LANE)
    tile_n = _round_up(min(tile_n, _round_up(n, _SUBLANE)), _SUBLANE)
    n_p = _round_up(n, tile_n)
    num_tiles = n_p // tile_n

    def pad2(a, rows, cols, dtype):
        a = jnp.pad(a, ((0, rows - a.shape[0]), (0, cols - a.shape[1])))
        return a.astype(dtype)

    # Inputs: bf16, rows zero-padded only (cast fused into the pad/stack).
    x = jnp.stack([pad2(online_x, n_p, d_in, jnp.bfloat16),
                   pad2(target_x, n_p, d_in, jnp.bfloat16)])    # [2, N_p, Din]
    w1p = pad2(w1, d_in, h_p, jnp.bfloat16)
    b1p = pad2(b1.reshape(1, -1), 1, h_p, jnp.float32)
    w2p = pad2(w2, h_p, d_out_p, jnp.bfloat16)
    b2p = pad2(b2.reshape(1, -1), 1, d_out_p, jnp.float32)

    kernel = functools.partial(_cca_ssg_kernel,
                               n_rows=n, d_out=d_out, tile_n=tile_n)

    flops = 2 * 2 * n_p * (d_in * h_p + h_p * d_out_p)
    bytes_accessed = (x.size * 2                       # bf16 x stream
                      + (w1p.size + w2p.size) * 2      # bf16 weights
                      + (b1p.size + b2p.size) * 4
                      + 2 * n_p * d_out_p * 4)         # f32 z writeback

    # Explicit VMEM budget (v7x has only 64 MiB physical per TensorCore).
    vmem_est = (3 * tile_n * d_in * 2                  # pipelined x tiles
                + 2 * ((w1p.size + w2p.size) * 2 + (b1p.size + b2p.size) * 4)
                + 2 * n_p * d_out_p * 4                # resident per-view block
                + 4 * d_out_p * 4)                     # stats scratch
    vmem_limit = int(min(max(vmem_est + (4 << 20), 32 << 20), 60 << 20))

    z = pl.pallas_call(
        kernel,
        out_shape=jax.ShapeDtypeStruct((2, n_p, d_out_p), jnp.float32),
        grid_spec=pltpu.PrefetchScalarGridSpec(
            num_scalar_prefetch=0,
            grid=(2, num_tiles),
            in_specs=[
                # x: row-tiled + software-pipelined; view dim squeezed out.
                # (If xprof shows exposed DMA at small tiles, add
                #  pipeline_mode=pl.Buffered(3) here.)
                pl.BlockSpec((None, tile_n, d_in), lambda v, t: (v, t, 0)),
                # weights/biases: same block for every grid point -> resident.
                pl.BlockSpec((d_in, h_p), lambda v, t: (0, 0)),
                pl.BlockSpec((1, h_p), lambda v, t: (0, 0)),
                pl.BlockSpec((h_p, d_out_p), lambda v, t: (0, 0)),
                pl.BlockSpec((1, d_out_p), lambda v, t: (0, 0)),
            ],
            # Output block resident across the (last, "arbitrary") row-tile
            # axis; normalized in place on the final tile of each view.
            out_specs=pl.BlockSpec((None, n_p, d_out_p), lambda v, t: (v, 0, 0)),
            scratch_shapes=[pltpu.VMEM((1, d_out_p), jnp.float32),   # sum
                            pltpu.VMEM((1, d_out_p), jnp.float32)],  # sum of sq
        ),
        compiler_params=pltpu.CompilerParams(
            dimension_semantics=("parallel", "arbitrary"),
            vmem_limit_bytes=vmem_limit,
        ),
        cost_estimate=pl.CostEstimate(
            flops=flops,
            transcendentals=2 * d_out_p,
            bytes_accessed=bytes_accessed,
        ),
    )(x, w1p, b1p, w2p, b2p)

    return z[0, :n, :d_out], z[1, :n, :d_out]


def _reference(online_x, target_x, params, *, bf16_matmul):
    """Pure-JAX reference of the same math (optionally emulating bf16 operands)."""
    w1, b1, w2, b2 = params

    def enc(x):
        if bf16_matmul:
            h = jnp.dot(x.astype(jnp.bfloat16), w1.astype(jnp.bfloat16),
                        preferred_element_type=jnp.float32) + b1
            h = jnp.maximum(h, 0.0)
            return jnp.dot(h.astype(jnp.bfloat16), w2.astype(jnp.bfloat16),
                           preferred_element_type=jnp.float32) + b2
        h = jnp.maximum(x @ w1 + b1, 0.0)
        return h @ w2 + b2

    def znorm(r):
        mean = r.mean(0)
        std = jnp.std(r, axis=0, ddof=1)   # torch.std: unbiased (N - 1)
        return (r - mean) / std

    return znorm(enc(online_x)), znorm(enc(target_x))


if __name__ == "__main__":
    # N deliberately not a multiple of the row tile so the padded-row masking
    # of the streamed statistics is exercised.
    N, D_IN, HIDDEN, D_OUT = 250, 32, 64, 32

    key = jax.random.PRNGKey(0)
    k_xa, k_xb, k_w1, k_b1, k_w2, k_b2 = jax.random.split(key, 6)

    online_x = jax.random.normal(k_xa, (N, D_IN), dtype=jnp.float32)
    target_x = jax.random.normal(k_xb, (N, D_IN), dtype=jnp.float32)

    # Deterministic synthetic encoder parameters (no checkpoint load).
    w1 = jax.random.normal(k_w1, (D_IN, HIDDEN), dtype=jnp.float32) * 0.1
    b1 = jax.random.normal(k_b1, (HIDDEN,), dtype=jnp.float32) * 0.05
    w2 = jax.random.normal(k_w2, (HIDDEN, D_OUT), dtype=jnp.float32) * 0.1
    b2 = jax.random.normal(k_b2, (D_OUT,), dtype=jnp.float32) * 0.05
    params = (w1, b1, w2, b2)

    z1_m, z2_m = _reference(online_x, target_x, params, bf16_matmul=True)
    z1_f, z2_f = _reference(online_x, target_x, params, bf16_matmul=False)

    # tile_n=128 -> multi-tile accumulation path; tile_n=512 -> single-tile path.
    for tn in (128, 512):
        z1, z2 = cca_ssg_forward(online_x, target_x, params, tile_n=tn)
        jax.block_until_ready((z1, z2))
        assert z1.shape == (N, D_OUT) and z2.shape == (N, D_OUT)

        # 1) Tight check against a reference doing the exact same
        #    (bf16-operand, f32-accumulate) math.
        assert jnp.allclose(z1, z1_m, atol=2e-3, rtol=2e-3)
        assert jnp.allclose(z2, z2_m, atol=2e-3, rtol=2e-3)

        # 2) Loose check against the pure-f32 torch-semantics reference.
        assert jnp.allclose(z1, z1_f, atol=1e-1, rtol=1e-1)
        assert jnp.allclose(z2, z2_f, atol=1e-1, rtol=1e-1)

    print("KERNEL_OK")
</pallas_src>

<mosaic_0001>
module attributes {stable_mosaic.version = 11 : i64} {
  func.func @_cca_ssg_kernel(%arg0: i32, %arg1: i32, %arg2: memref<1x128x32xbf16, #tpu.memory_space<vmem>>, %arg3: memref<32x128xbf16, #tpu.memory_space<vmem>>, %arg4: memref<1x128xf32, #tpu.memory_space<vmem>>, %arg5: memref<128x128xbf16, #tpu.memory_space<vmem>>, %arg6: memref<1x128xf32, #tpu.memory_space<vmem>>, %arg7: memref<1x256x128xf32, #tpu.memory_space<vmem>>, %arg8: memref<1x128xf32, #tpu.memory_space<vmem>>, %arg9: memref<1x128xf32, #tpu.memory_space<vmem>>) attributes {dimension_semantics = [#tpu.dimension_semantics<parallel>, #tpu.dimension_semantics<arbitrary>], iteration_bounds = array<i64: 2, 2>, scalar_prefetch = 0 : i64, scratch_operands = 2 : i64, tpu.core_type = #tpu.core_type<tc>, window_params = [{transform_indices = @transform_0, window_bounds = array<i64: 1, 128, 32>}, {pipeline_mode = #tpu.pipeline_mode<synchronous>, transform_indices = @transform_1, window_bounds = array<i64: 32, 128>}, {pipeline_mode = #tpu.pipeline_mode<synchronous>, transform_indices = @transform_2, window_bounds = array<i64: 1, 128>}, {pipeline_mode = #tpu.pipeline_mode<synchronous>, transform_indices = @transform_3, window_bounds = array<i64: 128, 128>}, {pipeline_mode = #tpu.pipeline_mode<synchronous>, transform_indices = @transform_4, window_bounds = array<i64: 1, 128>}, {transform_indices = @transform_5, window_bounds = array<i64: 1, 256, 128>}]} {
    %c0_i32 = arith.constant 0 : i32
    %0 = arith.cmpi eq, %arg1, %c0_i32 : i32
    %1 = arith.extui %0 : i1 to i32
    %c0_i32_0 = arith.constant 0 : i32
    %2 = arith.cmpi ne, %1, %c0_i32_0 : i32
    scf.if %2 {
      %cst_27 = arith.constant 0.000000e+00 : f32
      %47 = vector.broadcast %cst_27 : f32 to vector<1x128xf32>
      %c0_28 = arith.constant 0 : index
      %c0_29 = arith.constant 0 : index
      %48 = vector.load %arg8[%c0_28, %c0_29] : memref<1x128xf32, #tpu.memory_space<vmem>>, vector<1x128xf32>
      tpu.vector_store %arg8[%c0_28, %c0_29], %47 {strides = array<i32>} : memref<1x128xf32, #tpu.memory_space<vmem>>, vector<1x128xf32>,
      %cst_30 = arith.constant 0.000000e+00 : f32
      %49 = vector.broadcast %cst_30 : f32 to vector<1x128xf32>
      %c0_31 = arith.constant 0 : index
      %c0_32 = arith.constant 0 : index
      %50 = vector.load %arg9[%c0_31, %c0_32] : memref<1x128xf32, #tpu.memory_space<vmem>>, vector<1x128xf32>
      tpu.vector_store %arg9[%c0_31, %c0_32], %49 {strides = array<i32>} : memref<1x128xf32, #tpu.memory_space<vmem>>, vector<1x128xf32>,
    } else {
    }
    %c0 = arith.constant 0 : index
    %c0_1 = arith.constant 0 : index
    %c0_2 = arith.constant 0 : index
    %3 = vector.load %arg2[%c0, %c0_1, %c0_2] : memref<1x128x32xbf16, #tpu.memory_space<vmem>>, vector<1x128x32xbf16>
    %4 = vector.shape_cast %3 : vector<1x128x32xbf16> to vector<128x32xbf16>
    %c0_3 = arith.constant 0 : index
    %c0_4 = arith.constant 0 : index
    %5 = vector.load %arg3[%c0_3, %c0_4] : memref<32x128xbf16, #tpu.memory_space<vmem>>, vector<32x128xbf16>
    %cst = arith.constant dense<0.000000e+00> : vector<128x128xf32>
    %6 = tpu.matmul %4, %5, %cst {dimension_numbers = #tpu.dot_dimension_numbers<[1], [0], [0], [1], [0, 0, 1, 1], [], []>} : vector<128x32xbf16>, vector<32x128xbf16>, vector<128x128xf32> -> vector<128x128xf32>
    %c0_5 = arith.constant 0 : index
    %c0_6 = arith.constant 0 : index
    %7 = vector.load %arg4[%c0_5, %c0_6] : memref<1x128xf32, #tpu.memory_space<vmem>>, vector<1x128xf32>
    %8 = vector.broadcast %7 : vector<1x128xf32> to vector<128x128xf32>
    %9 = arith.addf %6, %8 : vector<128x128xf32>
    %cst_7 = arith.constant 0.000000e+00 : f32
    %10 = vector.broadcast %cst_7 : f32 to vector<128x128xf32>
    %11 = arith.maximumf %9, %10 : vector<128x128xf32>
    %12 = arith.truncf %11 : vector<128x128xf32> to vector<128x128xbf16>
    %c0_8 = arith.constant 0 : index
    %c0_9 = arith.constant 0 : index
    %13 = vector.load %arg5[%c0_8, %c0_9] : memref<128x128xbf16, #tpu.memory_space<vmem>>, vector<128x128xbf16>
    %cst_10 = arith.constant dense<0.000000e+00> : vector<128x128xf32>
    %14 = tpu.matmul %12, %13, %cst_10 {dimension_numbers = #tpu.dot_dimension_numbers<[1], [0], [0], [1], [0, 0, 1, 1], [], []>} : vector<128x128xbf16>, vector<128x128xbf16>, vector<128x128xf32> -> vector<128x128xf32>
    %c0_11 = arith.constant 0 : index
    %c0_12 = arith.constant 0 : index
    %15 = vector.load %arg6[%c0_11, %c0_12] : memref<1x128xf32, #tpu.memory_space<vmem>>, vector<1x128xf32>
    %16 = vector.broadcast %15 : vector<1x128xf32> to vector<128x128xf32>
    %17 = arith.addf %14, %16 : vector<128x128xf32>
    %c128_i32 = arith.constant 128 : i32
    %18 = arith.muli %arg1, %c128_i32 : i32
    %19 = tpu.assume_multiple %18, 128 : i32
    %c0_13 = arith.constant 0 : index
    %20 = arith.index_cast %19 : i32 to index
    %c0_14 = arith.constant 0 : index
    %21 = vector.load %arg7[%c0_13, %20, %c0_14] : memref<1x256x128xf32, #tpu.memory_space<vmem>>, vector<1x128x128xf32>
    %22 = vector.shape_cast %21 : vector<1x128x128xf32> to vector<128x128xf32>
    %23 = vector.shape_cast %17 : vector<128x128xf32> to vector<1x128x128xf32>
    tpu.vector_store %arg7[%c0_13, %20, %c0_14], %23 {strides = array<i32>} : memref<1x256x128xf32, #tpu.memory_space<vmem>>, vector<1x128x128xf32>,
    %24 = tpu.iota {dimensions = array<i32: 0>} : vector<128x1xi32>
    %25 = vector.broadcast %19 : i32 to vector<128x1xi32>
    %26 = arith.addi %25, %24 : vector<128x1xi32>
    %c250_i32 = arith.constant 250 : i32
    %27 = vector.broadcast %c250_i32 : i32 to vector<128x1xi32>
    %28 = arith.cmpi slt, %26, %27 : vector<128x1xi32>
    %cst_15 = arith.constant 0.000000e+00 : f32
    %29 = vector.shape_cast %28 : vector<128x1xi1> to vector<128x1xi1>
    %30 = vector.broadcast %29 : vector<128x1xi1> to vector<128x128xi1>
    %31 = vector.broadcast %cst_15 : f32 to vector<128x128xf32>
    %32 = arith.select %30, %17, %31 : vector<128x128xi1>, vector<128x128xf32>
    %c0_16 = arith.constant 0 : index
    %c0_17 = arith.constant 0 : index
    %33 = vector.load %arg8[%c0_16, %c0_17] : memref<1x128xf32, #tpu.memory_space<vmem>>, vector<1x128xf32>
    %cst_18 = arith.constant dense<0.000000e+00> : vector<128xf32>
    %34 = vector.multi_reduction <add>, %32, %cst_18 [0] : vector<128x128xf32> to vector<128xf32>
    %35 = vector.shape_cast %34 : vector<128xf32> to vector<1x128xf32>
    %36 = arith.addf %33, %35 : vector<1x128xf32>
    %c0_19 = arith.constant 0 : index
    %c0_20 = arith.constant 0 : index
    %37 = vector.load %arg8[%c0_19, %c0_20] : memref<1x128xf32, #tpu.memory_space<vmem>>, vector<1x128xf32>
    tpu.vector_store %arg8[%c0_19, %c0_20], %36 {strides = array<i32>} : memref<1x128xf32, #tpu.memory_space<vmem>>, vector<1x128xf32>,
    %c0_21 = arith.constant 0 : index
    %c0_22 = arith.constant 0 : index
    %38 = vector.load %arg9[%c0_21, %c0_22] : memref<1x128xf32, #tpu.memory_space<vmem>>, vector<1x128xf32>
    %39 = arith.mulf %32, %17 : vector<128x128xf32>
    %cst_23 = arith.constant dense<0.000000e+00> : vector<128xf32>
    %40 = vector.multi_reduction <add>, %39, %cst_23 [0] : vector<128x128xf32> to vector<128xf32>
    %41 = vector.shape_cast %40 : vector<128xf32> to vector<1x128xf32>
    %42 = arith.addf %38, %41 : vector<1x128xf32>
    %c0_24 = arith.constant 0 : index
    %c0_25 = arith.constant 0 : index
    %43 = vector.load %arg9[%c0_24, %c0_25] : memref<1x128xf32, #tpu.memory_space<vmem>>, vector<1x128xf32>
    tpu.vector_store %arg9[%c0_24, %c0_25], %42 {strides = array<i32>} : memref<1x128xf32, #tpu.memory_space<vmem>>, vector<1x128xf32>,
    %c1_i32 = arith.constant 1 : i32
    %44 = arith.cmpi eq, %arg1, %c1_i32 : i32
    %45 = arith.extui %44 : i1 to i32
    %c0_i32_26 = arith.constant 0 : i32
    %46 = arith.cmpi ne, %45, %c0_i32_26 : i32
    scf.if %46 {
      %47 = tpu.iota {dimensions = array<i32: 1>} : vector<1x128xi32>
      %c32_i32 = arith.constant 32 : i32
      %48 = vector.broadcast %c32_i32 : i32 to vector<1x128xi32>
      %49 = arith.cmpi slt, %47, %48 : vector<1x128xi32>
      %c0_27 = arith.constant 0 : index
      %c0_28 = arith.constant 0 : index
      %50 = vector.load %arg8[%c0_27, %c0_28] : memref<1x128xf32, #tpu.memory_space<vmem>>, vector<1x128xf32>
      %cst_29 = arith.constant 4.000000e-03 : f32
      %51 = vector.broadcast %cst_29 : f32 to vector<1x128xf32>
      %52 = arith.mulf %50, %51 : vector<1x128xf32>
      %c0_30 = arith.constant 0 : index
      %c0_31 = arith.constant 0 : index
      %53 = vector.load %arg9[%c0_30, %c0_31] : memref<1x128xf32, #tpu.memory_space<vmem>>, vector<1x128xf32>
      %cst_32 = arith.constant 2.500000e+02 : f32
      %54 = vector.broadcast %cst_32 : f32 to vector<1x128xf32>
      %55 = arith.mulf %54, %52 : vector<1x128xf32>
      %56 = arith.mulf %55, %52 : vector<1x128xf32>
      %57 = arith.subf %53, %56 : vector<1x128xf32>
      %cst_33 = arith.constant 2.490000e+02 : f32
      %58 = vector.broadcast %cst_33 : f32 to vector<1x128xf32>
      %59 = arith.divf %57, %58 : vector<1x128xf32>
      %cst_34 = arith.constant 0.000000e+00 : f32
      %60 = vector.broadcast %cst_34 : f32 to vector<1x128xf32>
      %61 = arith.maximumf %59, %60 : vector<1x128xf32>
      %62 = math.rsqrt %61 : vector<1x128xf32>
      %cst_35 = arith.constant 0.000000e+00 : f32
      %63 = vector.broadcast %cst_35 : f32 to vector<1x128xf32>
      %64 = arith.select %49, %62, %63 : vector<1x128xi1>, vector<1x128xf32>
      %c0_36 = arith.constant 0 : index
      %c0_37 = arith.constant 0 : index
      %c0_38 = arith.constant 0 : index
      %65 = vector.load %arg7[%c0_36, %c0_37, %c0_38] : memref<1x256x128xf32, #tpu.memory_space<vmem>>, vector<1x256x128xf32>
      %66 = vector.shape_cast %65 : vector<1x256x128xf32> to vector<256x128xf32>
      %67 = vector.broadcast %52 : vector<1x128xf32> to vector<256x128xf32>
      %68 = arith.subf %66, %67 : vector<256x128xf32>
      %69 = vector.broadcast %64 : vector<1x128xf32> to vector<256x128xf32>
      %70 = arith.mulf %68, %69 : vector<256x128xf32>
      %c0_39 = arith.constant 0 : index
      %c0_40 = arith.constant 0 : index
      %c0_41 = arith.constant 0 : index
      %71 = vector.load %arg7[%c0_39, %c0_40, %c0_41] : memref<1x256x128xf32, #tpu.memory_space<vmem>>, vector<1x256x128xf32>
      %72 = vector.shape_cast %71 : vector<1x256x128xf32> to vector<256x128xf32>
      %73 = vector.shape_cast %70 : vector<256x128xf32> to vector<1x256x128xf32>
      tpu.vector_store %arg7[%c0_39, %c0_40, %c0_41], %73 {strides = array<i32>} : memref<1x256x128xf32, #tpu.memory_space<vmem>>, vector<1x256x128xf32>,
    } else {
    }
    return
  }
  func.func @transform_0(%arg0: i32, %arg1: i32) -> (i32, i32, i32) {
    %c0_i32 = arith.constant 0 : i32
    %c0_i32_0 = arith.constant 0 : i32
    return %arg0, %arg1, %c0_i32 : i32, i32, i32
  }
  func.func @transform_1(%arg0: i32, %arg1: i32) -> (i32, i32) {
    %c0_i32 = arith.constant 0 : i32
    %c0_i32_0 = arith.constant 0 : i32
    %c0_i32_1 = arith.constant 0 : i32
    return %c0_i32, %c0_i32_0 : i32, i32
  }
  func.func @transform_2(%arg0: i32, %arg1: i32) -> (i32, i32) {
    %c0_i32 = arith.constant 0 : i32
    %c0_i32_0 = arith.constant 0 : i32
    %c0_i32_1 = arith.constant 0 : i32
    return %c0_i32, %c0_i32_0 : i32, i32
  }
  func.func @transform_3(%arg0: i32, %arg1: i32) -> (i32, i32) {
    %c0_i32 = arith.constant 0 : i32
    %c0_i32_0 = arith.constant 0 : i32
    %c0_i32_1 = arith.constant 0 : i32
    return %c0_i32, %c0_i32_0 : i32, i32
  }
  func.func @transform_4(%arg0: i32, %arg1: i32) -> (i32, i32) {
    %c0_i32 = arith.constant 0 : i32
    %c0_i32_0 = arith.constant 0 : i32
    %c0_i32_1 = arith.constant 0 : i32
    return %c0_i32, %c0_i32_0 : i32, i32
  }
  func.func @transform_5(%arg0: i32, %arg1: i32) -> (i32, i32, i32) {
    %c0_i32 = arith.constant 0 : i32
    %c0_i32_0 = arith.constant 0 : i32
    %c0_i32_1 = arith.constant 0 : i32
    return %arg0, %c0_i32, %c0_i32_0 : i32, i32, i32
  }
}

</mosaic_0001>

<llo_original>
// kernel: tpu_custom_call.1
$region0: #{tpu_custom_call.1}
  #allocation0 [shape = 'u32[]', space=smem, size = 0x4, offset = 0x4, fixed_abs, tag = 'smem constant byte address 0x4 - core index']
  #allocation1 [shape = 'u32[144,128]{1,0:T(1,128)}', space=vmem, size = 0x12000, scoped, tag = 'internal scratch']
  #allocation2 [shape = 'f32[1,128]{1,0:T(1,128)}', space=vmem, size = 0x200, scoped, tag = 'scratch operand']
  #allocation3 [shape = 'f32[1,128]{1,0:T(1,128)}', space=vmem, size = 0x200, scoped, tag = 'scratch operand']
  %s0 = inlined_call_operand.vmem [shape: bf16[2,256,32], index: 0, kind: input, shape index: {}]
  %s1 = inlined_call_operand.vmem [shape: bf16[32,128], index: 1, kind: input, shape index: {}]
  %s2 = inlined_call_operand.vmem [shape: f32[1,128], index: 2, kind: input, shape index: {}]
  %s3 = inlined_call_operand.vmem [shape: bf16[128,128], index: 3, kind: input, shape index: {}]
  %s4 = inlined_call_operand.vmem [shape: f32[1,128], index: 4, kind: input, shape index: {}]
  %s5 = inlined_call_operand.hbm [shape: f32[2,256,128], index: 5, kind: output, shape index: {}]
  %s6 = sld [smem:[#allocation0]]
  $region61: #{tpu_custom_call.1} parent=0
    _
  %s8 = ssub.s32 1, %s6
  %s9 = scalar_select 0, %s8, %s6
  $region1: #{tpu_custom_call.1} parent=0
    #allocation4 [shape = 'u8[262144]{0}', space=vmem, size = 0x40000, scoped, tag = 'output window, operand 0']
    #allocation5 [shape = 's32[2]{0}', space=sflag, size = 0x8, scoped, tag = 'scoped memory for tpu_custom_call.1']
    %10 = vsyncpa [#allocation5], 0
    %s11 = scalar_lea.sflag [#allocation5], 1
    %12 = vsyncpa %s11, 0
    loop: start=0, step=1, limit=6
    $region2: #{tpu_custom_call.1} parent=1 // loop_pre_header
      _
    $region3: #{tpu_custom_call.1} parent=1 // loop_header
      %s14 = sphi 0, %s18
      %p15 = scmp.ge.s32.totalorder %s14, 6
      %s21 = sphi 0, %s33
      %s22 = sphi 0, %s29
      %s23 = sphi 0, %s21
      %s24 = sphi 0, %s22
      %s25 = sphi 0, %s23
      %s26 = sphi 0, %s24
      %s38 = sphi 0, %s40
      %s41 = sphi 0, %s38
      %s42 = sphi 0, %s41
      %s58 = sphi 0, %s42
      %s62 = sphi 0, %s62
      %s64 = sphi 0, %s62
      %s65 = sphi 0, %s64
      %s79 = sphi 0, %s65
      %s83 = sphi 0, %s83
      %s85 = sphi 0, %s83
      %s86 = sphi 0, %s85
      %s100 = sphi 0, %s86
      %s104 = sphi 0, %s104
      %s106 = sphi 0, %s104
      %s107 = sphi 0, %s106
      %s121 = sphi 0, %s107
      %s125 = sphi 0, %s125
      %s127 = sphi 0, %s125
      %s128 = sphi 0, %s127
      %s142 = sphi 0, %s128
      %s148 = sphi 0, %s150
      %s151 = sphi 0, %s148
      %s152 = sphi 0, %s151
      %s168 = sphi 0, %s152
    $region4: #{tpu_custom_call.1} parent=1 // loop_header_branch
      %17 = sbr.rel (%p15) target = $region8
    $region5: #{tpu_custom_call.1} parent=1 // loop_body
      %s19 = ssub.s32 %s14, 1
      %s20 = ssub.s32 %s14, 2
      %s27 = sadd.s32 1, %s22
      %p28 = scmp.ge.s32.totalorder %s27, 2
      %s29 = scalar_select %p28, 0, %s27
      %s30 = sadd.s32 1, %s21
      %s31 = scalar_select %p28, %s30, %s21
      %p32 = scmp.ge.s32.totalorder %s31, 2
      %s33 = scalar_select %p32, 0, %s31
      %s34 = ssub.s32 %s21, %s33
      %s35 = ssub.s32 %s22, %s29
      %s36 = sor.u32 %s34, %s35
      %p37 = scmp.eq.s32.totalorder %s36, 0
      %s39 = sadd.s32 %s38, 1
      %s40 = scalar_select %p37, %s38, %s39
      %p43 = pneg %p37
      %p44 = scmp.eq.s32.totalorder %s14, 3
      %p45 = por %p43, %p44
      %p46 = scmp.ne.s32.totalorder %s38, %s41
      %p47 = scmp.eq.s32.totalorder %s14, 0
      %p48 = por %p46, %p47
      %p49 = scmp.ne.s32.totalorder %s38, %s41
      %p50 = scmp.eq.s32.totalorder %s19, 3
      %p51 = por %p49, %p50
      %p52 = scmp.ne.s32.totalorder %s41, %s42
      %p53 = scmp.eq.s32.totalorder %s19, 0
      %p54 = por %p52, %p53
      %p55 = scmp.ne.s32.totalorder %s41, %s42
      %p56 = scmp.eq.s32.totalorder %s20, 3
      %p57 = por %p55, %p56
      %p59 = scmp.ne.s32.totalorder %s42, %s58
      %p60 = scmp.eq.s32.totalorder %s20, 0
      %p61 = por %p59, %p60
      %s63 = sadd.s32 %s62, 1
      %p66 = scmp.eq.s32.totalorder %s14, 3
      %p67 = scmp.ne.s32.totalorder %s62, %s64
      %p68 = scmp.eq.s32.totalorder %s14, 0
      %p69 = por %p67, %p68
      %p70 = scmp.ne.s32.totalorder %s62, %s64
      %p71 = scmp.eq.s32.totalorder %s19, 3
      %p72 = por %p70, %p71
      %p73 = scmp.ne.s32.totalorder %s64, %s65
      %p74 = scmp.eq.s32.totalorder %s19, 0
      %p75 = por %p73, %p74
      %p76 = scmp.ne.s32.totalorder %s64, %s65
      %p77 = scmp.eq.s32.totalorder %s20, 3
      %p78 = por %p76, %p77
      %p80 = scmp.ne.s32.totalorder %s65, %s79
      %p81 = scmp.eq.s32.totalorder %s20, 0
      %p82 = por %p80, %p81
      %s84 = sadd.s32 %s83, 1
      %p87 = scmp.eq.s32.totalorder %s14, 3
      %p88 = scmp.ne.s32.totalorder %s83, %s85
      %p89 = scmp.eq.s32.totalorder %s14, 0
      %p90 = por %p88, %p89
      %p91 = scmp.ne.s32.totalorder %s83, %s85
      %p92 = scmp.eq.s32.totalorder %s19, 3
      %p93 = por %p91, %p92
      %p94 = scmp.ne.s32.totalorder %s85, %s86
      %p95 = scmp.eq.s32.totalorder %s19, 0
      %p96 = por %p94, %p95
      %p97 = scmp.ne.s32.totalorder %s85, %s86
      %p98 = scmp.eq.s32.totalorder %s20, 3
      %p99 = por %p97, %p98
      %p101 = scmp.ne.s32.totalorder %s86, %s100
      %p102 = scmp.eq.s32.totalorder %s20, 0
      %p103 = por %p101, %p102
      %s105 = sadd.s32 %s104, 1
      %p108 = scmp.eq.s32.totalorder %s14, 3
      %p109 = scmp.ne.s32.totalorder %s104, %s106
      %p110 = scmp.eq.s32.totalorder %s14, 0
      %p111 = por %p109, %p110
      %p112 = scmp.ne.s32.totalorder %s104, %s106
      %p113 = scmp.eq.s32.totalorder %s19, 3
      %p114 = por %p112, %p113
      %p115 = scmp.ne.s32.totalorder %s106, %s107
      %p116 = scmp.eq.s32.totalorder %s19, 0
      %p117 = por %p115, %p116
      %p118 = scmp.ne.s32.totalorder %s106, %s107
      %p119 = scmp.eq.s32.totalorder %s20, 3
      %p120 = por %p118, %p119
      %p122 = scmp.ne.s32.totalorder %s107, %s121
      %p123 = scmp.eq.s32.totalorder %s20, 0
      %p124 = por %p122, %p123
      %s126 = sadd.s32 %s125, 1
      %p129 = scmp.eq.s32.totalorder %s14, 3
      %p130 = scmp.ne.s32.totalorder %s125, %s127
      %p131 = scmp.eq.s32.totalorder %s14, 0
      %p132 = por %p130, %p131
      %p133 = scmp.ne.s32.totalorder %s125, %s127
      %p134 = scmp.eq.s32.totalorder %s19, 3
      %p135 = por %p133, %p134
      %p136 = scmp.ne.s32.totalorder %s127, %s128
      %p137 = scmp.eq.s32.totalorder %s19, 0
      %p138 = por %p136, %p137
      %p139 = scmp.ne.s32.totalorder %s127, %s128
      %p140 = scmp.eq.s32.totalorder %s20, 3
      %p141 = por %p139, %p140
      %p143 = scmp.ne.s32.totalorder %s128, %s142
      %p144 = scmp.eq.s32.totalorder %s20, 0
      %p145 = por %p143, %p144
      %s146 = ssub.s32 %s21, %s33
      %p147 = scmp.eq.s32.totalorder %s146, 0
      %s149 = sadd.s32 %s148, 1
      %s150 = scalar_select %p147, %s148, %s149
      %p153 = pneg %p147
      %p154 = scmp.eq.s32.totalorder %s14, 3
      %p155 = por %p153, %p154
      %p156 = scmp.ne.s32.totalorder %s148, %s151
      %p157 = scmp.eq.s32.totalorder %s14, 0
      %p158 = por %p156, %p157
      %p159 = scmp.ne.s32.totalorder %s148, %s151
      %p160 = scmp.eq.s32.totalorder %s19, 3
      %p161 = por %p159, %p160
      %p162 = scmp.ne.s32.totalorder %s151, %s152
      %p163 = scmp.eq.s32.totalorder %s19, 0
      %p164 = por %p162, %p163
      %p165 = scmp.ne.s32.totalorder %s151, %s152
      %p166 = scmp.eq.s32.totalorder %s20, 3
      %p167 = por %p165, %p166
      %p169 = scmp.ne.s32.totalorder %s152, %s168
      %p170 = scmp.eq.s32.totalorder %s20, 0
      %p171 = por %p169, %p170
      %p172 = scmp.le.s32.totalorder 1, %s14
      %p173 = scmp.lt.s32.totalorder %s14, 5
      %p174 = pnand %p172, %p173
      %p175 = pneg %p174
      // Predicated region
      $region9: #{tpu_custom_call.1} parent=5 // pred_check
        _
      $region10: #{tpu_custom_call.1} parent=5 // pred_check_branch
        %177 = sbr.rel (%p174) target = $region12
      $region11: #{tpu_custom_call.1} parent=5 // pred_region
        %s178 = ssub.s32 %s14, 1
        // Predicated region
        $region13: #{tpu_custom_call.1} parent=11 // pred_check
          %p179 = pneg %p75
        $region14: #{tpu_custom_call.1} parent=11 // pred_check_branch
          %181 = sbr.rel (%p179) target = $region16
        $region15: #{tpu_custom_call.1} parent=11 // pred_region
          _
        $region16: #{tpu_custom_call.1} parent=11 // pred_fallthru
          _
        // Predicated region
        $region17: #{tpu_custom_call.1} parent=11 // pred_check
          %p182 = pneg %p96
        $region18: #{tpu_custom_call.1} parent=11 // pred_check_branch
          %184 = sbr.rel (%p182) target = $region20
        $region19: #{tpu_custom_call.1} parent=11 // pred_region
          _
        $region20: #{tpu_custom_call.1} parent=11 // pred_fallthru
          _
        // Predicated region
        $region21: #{tpu_custom_call.1} parent=11 // pred_check
          %p185 = pneg %p117
        $region22: #{tpu_custom_call.1} parent=11 // pred_check_branch
          %187 = sbr.rel (%p185) target = $region24
        $region23: #{tpu_custom_call.1} parent=11 // pred_region
          _
        $region24: #{tpu_custom_call.1} parent=11 // pred_fallthru
          _
        // Predicated region
        $region25: #{tpu_custom_call.1} parent=11 // pred_check
          %p188 = pneg %p138
        $region26: #{tpu_custom_call.1} parent=11 // pred_check_branch
          %190 = sbr.rel (%p188) target = $region28
        $region27: #{tpu_custom_call.1} parent=11 // pred_region
          _
        $region28: #{tpu_custom_call.1} parent=11 // pred_fallthru
          _
      $region12: #{tpu_custom_call.1} parent=5 // pred_fallthru
        _
      %p191 = scmp.lt.s32.totalorder %s14, 4
      // Predicated region
      $region29: #{tpu_custom_call.1} parent=5 // pred_check
        %p192 = pneg %p191
      $region30: #{tpu_custom_call.1} parent=5 // pred_check_branch
        %194 = sbr.rel (%p192) target = $region32
      $region31: #{tpu_custom_call.1} parent=5 // pred_region
        // Predicated region
        $region33: #{tpu_custom_call.1} parent=31 // pred_check
          %p195 = pneg %p48
        $region34: #{tpu_custom_call.1} parent=31 // pred_check_branch
          %197 = sbr.rel (%p195) target = $region36
        $region35: #{tpu_custom_call.1} parent=31 // pred_region
          %s198 = smul.u32 16, %s22
          %p199 = scmp.lt.s32.totalorder %s21, 1
          %s200 = scalar_select %p199, %s21, 1
          %p201 = scmp.lt.s32.totalorder %s198, 31
          %s202 = scalar_select %p201, %s198, 31
          %s203 = smul.addr %s200, 32
          %s204 = sadd.s32 %s202, %s203
          %s205 = smul.addr %s204, 4
          %s206 = scalar_lea.vmem %s0, %s205
          %s207 = smul.u32 16, %s22
        $region36: #{tpu_custom_call.1} parent=31 // pred_fallthru
          _
      $region32: #{tpu_custom_call.1} parent=5 // pred_fallthru
        _
      %p208 = scmp.le.s32.totalorder 1, %s14
      %p209 = scmp.lt.s32.totalorder %s14, 5
      %p210 = pnand %p208, %p209
      %p211 = pneg %p210
      // Predicated region
      $region37: #{tpu_custom_call.1} parent=5 // pred_check
        _
      $region38: #{tpu_custom_call.1} parent=5 // pred_check_branch
        %213 = sbr.rel (%p210) target = $region40
      $region39: #{tpu_custom_call.1} parent=5 // pred_region
        %s214 = ssub.s32 %s14, 1
        %s215 = smul.u32 16, %s24
        %p216 = scmp.lt.s32.totalorder %s23, 1
        %s217 = scalar_select %p216, %s23, 1
        %p218 = scmp.lt.s32.totalorder %s215, 31
        %s219 = scalar_select %p218, %s215, 31
        %s220 = smul.addr %s217, 32
        %s221 = sadd.s32 %s219, %s220
        %s222 = smul.addr %s221, 4
        %s223 = scalar_lea.vmem %s0, %s222
        %p224 = pneg %p54
        %p225 = pneg %p51
        %p226 = pneg %p75
        %p227 = pneg %p72
        %p228 = pneg %p96
        %p229 = pneg %p93
        %p230 = pneg %p117
        %p231 = pneg %p114
        %p232 = pneg %p138
        %p233 = pneg %p135
        %p234 = pneg %p164
        %p235 = pneg %p161
        %s236 = sand.u32 %s151, 1
        %s237 = scalar_lea.sflag [#allocation5], %s236
        %s238 = sand.u32 %s151, 1
        %s239 = smul.addr %s238, 256
        %s240 = scalar_lea.vmem [#allocation4], %s239
        %s241 = smul.u32 16, %s24
        %p242 = scmp.lt.s32.totalorder %s23, 1
        %s243 = scalar_select %p242, %s23, 1
        %p244 = scmp.lt.s32.totalorder %s241, 31
        %s245 = scalar_select %p244, %s241, 31
        %s246 = smul.addr %s243, 32
        %s247 = sadd.s32 %s245, %s246
        %s248 = smul.addr %s247, 4
        %s249 = scalar_lea.vmem %s0, %s248
        %s250 = smul.u32 16, %s24
        %p252 = scmp.eq.s32.totalorder %s24, 0
        // Predicated region
        $region41: #{tpu_custom_call.1} parent=39 // pred_check
          %p253 = pneg %p252
        $region42: #{tpu_custom_call.1} parent=39 // pred_check_branch
          %255 = sbr.rel (%p253) target = $region44
        $region43: #{tpu_custom_call.1} parent=39 // pred_region
          %256 = vst [vmem:[#allocation2] sm:$0x1] 0.0
          %257 = vst [vmem:[#allocation3] sm:$0x1] 0.0
        $region44: #{tpu_custom_call.1} parent=39 // pred_fallthru
          _
        %v258 = vld [vmem:[%s249] sm:$0xf]
        %v259 = vld [vmem:[%s249 + $0x4] sm:$0xf]
        %v260 = vld [vmem:[%s249 + $0x8] sm:$0xf]
        %v261 = vld [vmem:[%s249 + $0xc] sm:$0xf]
        %v262 = vld [vmem:[%s249 + $0x10] sm:$0xf]
        %v263 = vld [vmem:[%s249 + $0x14] sm:$0xf]
        %v264 = vld [vmem:[%s249 + $0x18] sm:$0xf]
        %v265 = vld [vmem:[%s249 + $0x1c] sm:$0xf]
        %v266 = vld [vmem:[%s249 + $0x20] sm:$0xf]
        %v267 = vld [vmem:[%s249 + $0x24] sm:$0xf]
        %v268 = vld [vmem:[%s249 + $0x28] sm:$0xf]
        %v269 = vld [vmem:[%s249 + $0x2c] sm:$0xf]
        %v270 = vld [vmem:[%s249 + $0x30] sm:$0xf]
        %v271 = vld [vmem:[%s249 + $0x34] sm:$0xf]
        %v272 = vld [vmem:[%s249 + $0x38] sm:$0xf]
        %v273 = vld [vmem:[%s249 + $0x3c] sm:$0xf]
        %v274 = vld [vmem:[%s1] sm:$0xf]
        %v275 = vld [vmem:[%s1 + $0x4] sm:$0xf]
        %v276 = vld [vmem:[%s1 + $0x8] sm:$0xf]
        %v277 = vld [vmem:[%s1 + $0xc] sm:$0xf]
        %v278 = vld [vmem:[%s2] sm:$0x1]
        %v280 = vlaneseq
        %v281 = vshrl.u32 %v280, 7
        %v282 = vsub.s32 0, %v281
        %v283 = vrot.slane %v278, %v282
        %v301 = vunpack.c.l.b16 %v258
        %v302 = vunpack.c.l.b16 %v259
        %v303 = vunpack.c.l.b16 %v260
        %v304 = vunpack.c.l.b16 %v261
        %v305 = vunpack.c.l.b16 %v262
        %v306 = vunpack.c.l.b16 %v263
        %v307 = vunpack.c.l.b16 %v264
        %v308 = vunpack.c.l.b16 %v265
        %v309 = vunpack.c.l.b16 %v266
        %v310 = vunpack.c.l.b16 %v267
        %v311 = vunpack.c.l.b16 %v268
        %v312 = vunpack.c.l.b16 %v269
        %v313 = vunpack.c.l.b16 %v270
        %v314 = vunpack.c.l.b16 %v271
        %v315 = vunpack.c.l.b16 %v272
        %v316 = vunpack.c.l.b16 %v273
        %v317 = vpack.c.b16 %v302, %v301
        %v318 = vpack.c.b16 %v304, %v303
        %v319 = vpack.c.b16 %v306, %v305
        %v320 = vpack.c.b16 %v308, %v307
        %v321 = vpack.c.b16 %v310, %v309
        %v322 = vpack.c.b16 %v312, %v311
        %v323 = vpack.c.b16 %v314, %v313
        %v324 = vpack.c.b16 %v316, %v315
        %v329 = vunpack.c.l.b16 %v274
        %v330 = vunpack.c.l.b16 %v275
        %v331 = vunpack.c.l.b16 %v276
        %v332 = vunpack.c.l.b16 %v277
        %v333 = vpack.c.b16 %v330, %v329
        %v334 = vpack.c.b16 %v332, %v331
        %vm337 = vcmask 261120
        %v339 = vsel %vm337, %v317, 0
        %v342 = vsel %vm337, %v318, 0
        %v345 = vsel %vm337, %v319, 0
        %v348 = vsel %vm337, %v320, 0
        %v351 = vsel %vm337, %v321, 0
        %v354 = vsel %vm337, %v322, 0
        %v357 = vsel %vm337, %v323, 0
        %v360 = vsel %vm337, %v324, 0
        %362 = vmatprep.subr.bf16.mxu0 0
        %363 = vmatpush1.bf16.msra.mxu0 %v333
        %364 = vmatprep.subr.bf16.mxu0 0
        %365 = vmatpush1.bf16.msra.mxu0 %v334
        %366 = vmatprep.subr.bf16.mxu0 0
        %367 = vmatpush1.bf16.msra.mxu0 0
        %368 = vmatprep.subr.bf16.mxu0 0
        %369 = vmatpush1.bf16.msra.mxu0 0
        %370 = vmatprep.subr.bf16.mxu0 0
        %371 = vmatpush1.bf16.msra.mxu0 0
        %372 = vmatprep.subr.bf16.mxu0 0
        %373 = vmatpush1.bf16.msra.mxu0 0
        %374 = vmatprep.subr.bf16.mxu0 0
        %375 = vmatpush1.bf16.msra.mxu0 0
        %376 = vmatprep.subr.bf16.mxu0 0
        %377 = vmatpush1.bf16.msra.mxu0 0
        %378 = vmatprep.subr.bf16.mxu0 0
        %379 = vmatpush1.bf16.msra.mxu0 0
        %380 = vmatprep.subr.bf16.mxu0 0
        %381 = vmatpush1.bf16.msra.mxu0 0
        %382 = vmatprep.subr.bf16.mxu0 0
        %383 = vmatpush1.bf16.msra.mxu0 0
        %384 = vmatprep.subr.bf16.mxu0 0
        %385 = vmatpush1.bf16.msra.mxu0 0
        %386 = vmatprep.subr.bf16.mxu0 0
        %387 = vmatpush1.bf16.msra.mxu0 0
        %388 = vmatprep.subr.bf16.mxu0 0
        %389 = vmatpush1.bf16.msra.mxu0 0
        %390 = vmatprep.subr.bf16.mxu0 0
        %391 = vmatpush1.bf16.msra.mxu0 0
        %392 = vmatprep.subr.bf16.mxu0 0
        %393 = vmatpush1.bf16.msra.mxu0 0
        %394 = vmatprep.mubr.bf16.mxu0 0
        %395 = vmatmul.mubr.bf16.gmra.mrb[0].mxu0 %v339
        %v396 = vpop.f32.mrb[0].mxu0
        %v397 = vadd.f32 %v283, %v396
        %v398 = vpop.f32.mrb[0].mxu0
        %v399 = vpop.f32.mrb[0].mxu0
        %v400 = vadd.f32 %v283, %v399
        %v401 = vpop.f32.mrb[0].mxu0
        %402 = vmatprep.mubr.bf16.mxu0 0
        %403 = vmatmul.mubr.bf16.gmra.mrb[0].mxu0 %v342
        %v404 = vpop.f32.mrb[0].mxu0
        %v405 = vadd.f32 %v283, %v404
        %v406 = vpop.f32.mrb[0].mxu0
        %v407 = vpop.f32.mrb[0].mxu0
        %v408 = vadd.f32 %v283, %v407
        %v409 = vpop.f32.mrb[0].mxu0
        %410 = vmatprep.mubr.bf16.mxu0 0
        %411 = vmatmul.mubr.bf16.gmra.mrb[0].mxu0 %v345
        %v412 = vpop.f32.mrb[0].mxu0
        %v413 = vadd.f32 %v283, %v412
        %v414 = vpop.f32.mrb[0].mxu0
        %v415 = vpop.f32.mrb[0].mxu0
        %v416 = vadd.f32 %v283, %v415
        %v417 = vpop.f32.mrb[0].mxu0
        %418 = vmatprep.mubr.bf16.mxu0 0
        %419 = vmatmul.mubr.bf16.gmra.mrb[0].mxu0 %v348
        %v420 = vpop.f32.mrb[0].mxu0
        %v421 = vadd.f32 %v283, %v420
        %v422 = vpop.f32.mrb[0].mxu0
        %v423 = vpop.f32.mrb[0].mxu0
        %v424 = vadd.f32 %v283, %v423
        %v425 = vpop.f32.mrb[0].mxu0
        %426 = vmatprep.mubr.bf16.mxu0 0
        %427 = vmatmul.mubr.bf16.gmra.mrb[0].mxu0 %v351
        %v428 = vpop.f32.mrb[0].mxu0
        %v429 = vadd.f32 %v283, %v428
        %v430 = vpop.f32.mrb[0].mxu0
        %v431 = vpop.f32.mrb[0].mxu0
        %v432 = vadd.f32 %v283, %v431
        %v433 = vpop.f32.mrb[0].mxu0
        %434 = vmatprep.mubr.bf16.mxu0 0
        %435 = vmatmul.mubr.bf16.gmra.mrb[0].mxu0 %v354
        %v436 = vpop.f32.mrb[0].mxu0
        %v437 = vadd.f32 %v283, %v436
        %v438 = vpop.f32.mrb[0].mxu0
        %v439 = vpop.f32.mrb[0].mxu0
        %v440 = vadd.f32 %v283, %v439
        %v441 = vpop.f32.mrb[0].mxu0
        %442 = vmatprep.mubr.bf16.mxu0 0
        %443 = vmatmul.mubr.bf16.gmra.mrb[0].mxu0 %v357
        %v444 = vpop.f32.mrb[0].mxu0
        %v445 = vadd.f32 %v283, %v444
        %v446 = vpop.f32.mrb[0].mxu0
        %v447 = vpop.f32.mrb[0].mxu0
        %v448 = vadd.f32 %v283, %v447
        %v449 = vpop.f32.mrb[0].mxu0
        %450 = vmatprep.mubr.bf16.mxu0 0
        %451 = vmatmul.mubr.bf16.gmra.mrb[0].mxu0 %v360
        %v452 = vpop.f32.mrb[0].mxu0
        %v453 = vadd.f32 %v283, %v452
        %v454 = vpop.f32.mrb[0].mxu0
        %v455 = vpop.f32.mrb[0].mxu0
        %v456 = vadd.f32 %v283, %v455
        %v457 = vpop.f32.mrb[0].mxu0
        %458 = vdwg.mxu0
        %v459 = vmax.f32 %v397, 0.0
        %v460 = vmax.f32 %v400, 0.0
        %v461 = vmax.f32 %v405, 0.0
        %v462 = vmax.f32 %v408, 0.0
        %v463 = vmax.f32 %v413, 0.0
        %v464 = vmax.f32 %v416, 0.0
        %v465 = vmax.f32 %v421, 0.0
        %v466 = vmax.f32 %v424, 0.0
        %v467 = vmax.f32 %v429, 0.0
        %v468 = vmax.f32 %v432, 0.0
        %v469 = vmax.f32 %v437, 0.0
        %v470 = vmax.f32 %v440, 0.0
        %v471 = vmax.f32 %v445, 0.0
        %v472 = vmax.f32 %v448, 0.0
        %v473 = vmax.f32 %v453, 0.0
        %v474 = vmax.f32 %v456, 0.0
        %v475 = vpack.c.bf16 %v460, %v459
        %v476 = vpack.c.bf16 %v462, %v461
        %v477 = vpack.c.bf16 %v464, %v463
        %v478 = vpack.c.bf16 %v466, %v465
        %v479 = vpack.c.bf16 %v468, %v467
        %v480 = vpack.c.bf16 %v470, %v469
        %v481 = vpack.c.bf16 %v472, %v471
        %v482 = vpack.c.bf16 %v474, %v473
        %v483 = vld [vmem:[%s3] sm:$0xf]
        %v484 = vld [vmem:[%s3 + $0x4] sm:$0xf]
        %v485 = vld [vmem:[%s3 + $0x8] sm:$0xf]
        %v486 = vld [vmem:[%s3 + $0xc] sm:$0xf]
        %v487 = vld [vmem:[%s3 + $0x10] sm:$0xf]
        %v488 = vld [vmem:[%s3 + $0x14] sm:$0xf]
        %v489 = vld [vmem:[%s3 + $0x18] sm:$0xf]
        %v490 = vld [vmem:[%s3 + $0x1c] sm:$0xf]
        %v491 = vld [vmem:[%s3 + $0x20] sm:$0xf]
        %v492 = vld [vmem:[%s3 + $0x24] sm:$0xf]
        %v493 = vld [vmem:[%s3 + $0x28] sm:$0xf]
        %v494 = vld [vmem:[%s3 + $0x2c] sm:$0xf]
        %v495 = vld [vmem:[%s3 + $0x30] sm:$0xf]
        %v496 = vld [vmem:[%s3 + $0x34] sm:$0xf]
        %v497 = vld [vmem:[%s3 + $0x38] sm:$0xf]
        %v498 = vld [vmem:[%s3 + $0x3c] sm:$0xf]
        %v499 = vld [vmem:[%s4] sm:$0x1]
        %v501 = vlaneseq
        %v502 = vshrl.u32 %v501, 7
        %v503 = vsub.s32 0, %v502
        %v504 = vrot.slane %v499, %v503
        %v522 = vunpack.c.l.b16 %v483
        %v523 = vunpack.c.l.b16 %v484
        %v524 = vunpack.c.l.b16 %v485
        %v525 = vunpack.c.l.b16 %v486
        %v526 = vunpack.c.l.b16 %v487
        %v527 = vunpack.c.l.b16 %v488
        %v528 = vunpack.c.l.b16 %v489
        %v529 = vunpack.c.l.b16 %v490
        %v530 = vunpack.c.l.b16 %v491
        %v531 = vunpack.c.l.b16 %v492
        %v532 = vunpack.c.l.b16 %v493
        %v533 = vunpack.c.l.b16 %v494
        %v534 = vunpack.c.l.b16 %v495
        %v535 = vunpack.c.l.b16 %v496
        %v536 = vunpack.c.l.b16 %v497
        %v537 = vunpack.c.l.b16 %v498
        %v538 = vpack.c.b16 %v523, %v522
        %v539 = vpack.c.b16 %v525, %v524
        %v540 = vpack.c.b16 %v527, %v526
        %v541 = vpack.c.b16 %v529, %v528
        %v542 = vpack.c.b16 %v531, %v530
        %v543 = vpack.c.b16 %v533, %v532
        %v544 = vpack.c.b16 %v535, %v534
        %v545 = vpack.c.b16 %v537, %v536
        %554 = vmatprep.subr.bf16.mxu0 0
        %555 = vmatpush1.bf16.msra.mxu0 %v538
        %556 = vmatprep.subr.bf16.mxu0 0
        %557 = vmatpush1.bf16.msra.mxu0 %v539
        %558 = vmatprep.subr.bf16.mxu0 0
        %559 = vmatpush1.bf16.msra.mxu0 %v540
        %560 = vmatprep.subr.bf16.mxu0 0
        %561 = vmatpush1.bf16.msra.mxu0 %v541
        %562 = vmatprep.subr.bf16.mxu0 0
        %563 = vmatpush1.bf16.msra.mxu0 %v542
        %564 = vmatprep.subr.bf16.mxu0 0
        %565 = vmatpush1.bf16.msra.mxu0 %v543
        %566 = vmatprep.subr.bf16.mxu0 0
        %567 = vmatpush1.bf16.msra.mxu0 %v544
        %568 = vmatprep.subr.bf16.mxu0 0
        %569 = vmatpush1.bf16.msra.mxu0 %v545
        %570 = vmatprep.subr.bf16.mxu0 0
        %571 = vmatpush1.bf16.msra.mxu0 0
        %572 = vmatprep.subr.bf16.mxu0 0
        %573 = vmatpush1.bf16.msra.mxu0 0
        %574 = vmatprep.subr.bf16.mxu0 0
        %575 = vmatpush1.bf16.msra.mxu0 0
        %576 = vmatprep.subr.bf16.mxu0 0
        %577 = vmatpush1.bf16.msra.mxu0 0
        %578 = vmatprep.subr.bf16.mxu0 0
        %579 = vmatpush1.bf16.msra.mxu0 0
        %580 = vmatprep.subr.bf16.mxu0 0
        %581 = vmatpush1.bf16.msra.mxu0 0
        %582 = vmatprep.subr.bf16.mxu0 0
        %583 = vmatpush1.bf16.msra.mxu0 0
        %584 = vmatprep.subr.bf16.mxu0 0
        %585 = vmatpush1.bf16.msra.mxu0 0
        %586 = vmatprep.mubr.bf16.mxu0 0
        %587 = vmatmul.mubr.bf16.gmra.mrb[0].mxu0 %v475
        %v588 = vpop.f32.mrb[0].mxu0
        %v589 = vadd.f32 %v504, %v588
        %v590 = vpop.f32.mrb[0].mxu0
        %v591 = vpop.f32.mrb[0].mxu0
        %v592 = vadd.f32 %v504, %v591
        %v593 = vpop.f32.mrb[0].mxu0
        %594 = vmatprep.mubr.bf16.mxu0 0
        %595 = vmatmul.mubr.bf16.gmra.mrb[0].mxu0 %v476
        %v596 = vpop.f32.mrb[0].mxu0
        %v597 = vadd.f32 %v504, %v596
        %v598 = vpop.f32.mrb[0].mxu0
        %v599 = vpop.f32.mrb[0].mxu0
        %v600 = vadd.f32 %v504, %v599
        %v601 = vpop.f32.mrb[0].mxu0
        %602 = vmatprep.mubr.bf16.mxu0 0
        %603 = vmatmul.mubr.bf16.gmra.mrb[0].mxu0 %v477
        %v604 = vpop.f32.mrb[0].mxu0
        %v605 = vadd.f32 %v504, %v604
        %v606 = vpop.f32.mrb[0].mxu0
        %v607 = vpop.f32.mrb[0].mxu0
        %v608 = vadd.f32 %v504, %v607
        %v609 = vpop.f32.mrb[0].mxu0
        %610 = vmatprep.mubr.bf16.mxu0 0
        %611 = vmatmul.mubr.bf16.gmra.mrb[0].mxu0 %v478
        %v612 = vpop.f32.mrb[0].mxu0
        %v613 = vadd.f32 %v504, %v612
        %v614 = vpop.f32.mrb[0].mxu0
        %v615 = vpop.f32.mrb[0].mxu0
        %v616 = vadd.f32 %v504, %v615
        %v617 = vpop.f32.mrb[0].mxu0
        %618 = vmatprep.mubr.bf16.mxu0 0
        %619 = vmatmul.mubr.bf16.gmra.mrb[0].mxu0 %v479
        %v620 = vpop.f32.mrb[0].mxu0
        %v621 = vadd.f32 %v504, %v620
        %v622 = vpop.f32.mrb[0].mxu0
        %v623 = vpop.f32.mrb[0].mxu0
        %v624 = vadd.f32 %v504, %v623
        %v625 = vpop.f32.mrb[0].mxu0
        %626 = vmatprep.mubr.bf16.mxu0 0
        %627 = vmatmul.mubr.bf16.gmra.mrb[0].mxu0 %v480
        %v628 = vpop.f32.mrb[0].mxu0
        %v629 = vadd.f32 %v504, %v628
        %v630 = vpop.f32.mrb[0].mxu0
        %v631 = vpop.f32.mrb[0].mxu0
        %v632 = vadd.f32 %v504, %v631
        %v633 = vpop.f32.mrb[0].mxu0
        %634 = vmatprep.mubr.bf16.mxu0 0
        %635 = vmatmul.mubr.bf16.gmra.mrb[0].mxu0 %v481
        %v636 = vpop.f32.mrb[0].mxu0
        %v637 = vadd.f32 %v504, %v636
        %v638 = vpop.f32.mrb[0].mxu0
        %v639 = vpop.f32.mrb[0].mxu0
        %v640 = vadd.f32 %v504, %v639
        %v641 = vpop.f32.mrb[0].mxu0
        %642 = vmatprep.mubr.bf16.mxu0 0
        %643 = vmatmul.mubr.bf16.gmra.mrb[0].mxu0 %v482
        %v644 = vpop.f32.mrb[0].mxu0
        %v645 = vadd.f32 %v504, %v644
        %v646 = vpop.f32.mrb[0].mxu0
        %v647 = vpop.f32.mrb[0].mxu0
        %v648 = vadd.f32 %v504, %v647
        %v649 = vpop.f32.mrb[0].mxu0
        %650 = vdwg.mxu0
        %s651 = smul.u32 %s24, 128
        %s652 = scalar_lea.vmem %s240, %s651 [#allocation4]
        %653 = vst [vmem:[%s652] sm:$0xff] %v589
        %654 = vst [vmem:[%s652 + $0x8] sm:$0xff] %v592
        %655 = vst [vmem:[%s652 + $0x10] sm:$0xff] %v597
        %656 = vst [vmem:[%s652 + $0x18] sm:$0xff] %v600
        %657 = vst [vmem:[%s652 + $0x20] sm:$0xff] %v605
        %658 = vst [vmem:[%s652 + $0x28] sm:$0xff] %v608
        %659 = vst [vmem:[%s652 + $0x30] sm:$0xff] %v613
        %660 = vst [vmem:[%s652 + $0x38] sm:$0xff] %v616
        %661 = vst [vmem:[%s652 + $0x40] sm:$0xff] %v621
        %662 = vst [vmem:[%s652 + $0x48] sm:$0xff] %v624
        %663 = vst [vmem:[%s652 + $0x50] sm:$0xff] %v629
        %664 = vst [vmem:[%s652 + $0x58] sm:$0xff] %v632
        %665 = vst [vmem:[%s652 + $0x60] sm:$0xff] %v637
        %666 = vst [vmem:[%s652 + $0x68] sm:$0xff] %v640
        %667 = vst [vmem:[%s652 + $0x70] sm:$0xff] %v645
        %668 = vst [vmem:[%s652 + $0x78] sm:$0xff] %v648
        %v669 = vlaneseq
        %v670 = vshrl.u32 %v669, 7
        %v671 = vadd.s32 %v670, 8
        %v672 = vadd.s32 %v670, 16
        %v673 = vadd.s32 %v670, 24
        %v674 = vadd.s32 %v670, 32
        %v675 = vadd.s32 %v670, 40
        %v676 = vadd.s32 %v670, 48
        %v677 = vadd.s32 %v670, 56
        %v678 = vadd.s32 %v670, 64
        %v679 = vadd.s32 %v670, 72
        %v680 = vadd.s32 %v670, 80
        %v681 = vadd.s32 %v670, 88
        %v682 = vadd.s32 %v670, 96
        %v683 = vadd.s32 %v670, 104
        %v684 = vadd.s32 %v670, 112
        %v685 = vadd.s32 %v670, 120
        %v686 = vstv %s651
        %v687 = vadd.s32 %v686, %v670
        %v688 = vadd.s32 %v686, %v671
        %v689 = vadd.s32 %v686, %v672
        %v690 = vadd.s32 %v686, %v673
        %v691 = vadd.s32 %v686, %v674
        %v692 = vadd.s32 %v686, %v675
        %v693 = vadd.s32 %v686, %v676
        %v694 = vadd.s32 %v686, %v677
        %v695 = vadd.s32 %v686, %v678
        %v696 = vadd.s32 %v686, %v679
        %v697 = vadd.s32 %v686, %v680
        %v698 = vadd.s32 %v686, %v681
        %v699 = vadd.s32 %v686, %v682
        %v700 = vadd.s32 %v686, %v683
        %v701 = vadd.s32 %v686, %v684
        %v702 = vadd.s32 %v686, %v685
        %vm703 = vcmp.lt.s32.totalorder %v687, 250
        %vm704 = vcmp.lt.s32.totalorder %v688, 250
        %vm705 = vcmp.lt.s32.totalorder %v689, 250
        %vm706 = vcmp.lt.s32.totalorder %v690, 250
        %vm707 = vcmp.lt.s32.totalorder %v691, 250
        %vm708 = vcmp.lt.s32.totalorder %v692, 250
        %vm709 = vcmp.lt.s32.totalorder %v693, 250
        %vm710 = vcmp.lt.s32.totalorder %v694, 250
        %vm711 = vcmp.lt.s32.totalorder %v695, 250
        %vm712 = vcmp.lt.s32.totalorder %v696, 250
        %vm713 = vcmp.lt.s32.totalorder %v697, 250
        %vm714 = vcmp.lt.s32.totalorder %v698, 250
        %vm715 = vcmp.lt.s32.totalorder %v699, 250
        %vm716 = vcmp.lt.s32.totalorder %v700, 250
        %vm717 = vcmp.lt.s32.totalorder %v701, 250
        %vm718 = vcmp.lt.s32.totalorder %v702, 250
        %v719 = vsel %vm703, 1, 0
        %v720 = vsel %vm704, 1, 0
        %v721 = vsel %vm705, 1, 0
        %v722 = vsel %vm706, 1, 0
        %v723 = vsel %vm707, 1, 0
        %v724 = vsel %vm708, 1, 0
        %v725 = vsel %vm709, 1, 0
        %v726 = vsel %vm710, 1, 0
        %v727 = vsel %vm711, 1, 0
        %v728 = vsel %vm712, 1, 0
        %v729 = vsel %vm713, 1, 0
        %v730 = vsel %vm714, 1, 0
        %v731 = vsel %vm715, 1, 0
        %v732 = vsel %vm716, 1, 0
        %v733 = vsel %vm717, 1, 0
        %v734 = vsel %vm718, 1, 0
        %vm735 = vcmp.eq.s32.totalorder %v719, 1
        %vm736 = vcmp.eq.s32.totalorder %v720, 1
        %vm737 = vcmp.eq.s32.totalorder %v721, 1
        %vm738 = vcmp.eq.s32.totalorder %v722, 1
        %vm739 = vcmp.eq.s32.totalorder %v723, 1
        %vm740 = vcmp.eq.s32.totalorder %v724, 1
        %vm741 = vcmp.eq.s32.totalorder %v725, 1
        %vm742 = vcmp.eq.s32.totalorder %v726, 1
        %vm743 = vcmp.eq.s32.totalorder %v727, 1
        %vm744 = vcmp.eq.s32.totalorder %v728, 1
        %vm745 = vcmp.eq.s32.totalorder %v729, 1
        %vm746 = vcmp.eq.s32.totalorder %v730, 1
        %vm747 = vcmp.eq.s32.totalorder %v731, 1
        %vm748 = vcmp.eq.s32.totalorder %v732, 1
        %vm749 = vcmp.eq.s32.totalorder %v733, 1
        %vm750 = vcmp.eq.s32.totalorder %v734, 1
        %v751 = vsel %vm735, %v589, 0.0
        %v752 = vsel %vm736, %v592, 0.0
        %v753 = vsel %vm737, %v597, 0.0
        %v754 = vsel %vm738, %v600, 0.0
        %v755 = vsel %vm739, %v605, 0.0
        %v756 = vsel %vm740, %v608, 0.0
        %v757 = vsel %vm741, %v613, 0.0
        %v758 = vsel %vm742, %v616, 0.0
        %v759 = vsel %vm743, %v621, 0.0
        %v760 = vsel %vm744, %v624, 0.0
        %v761 = vsel %vm745, %v629, 0.0
        %v762 = vsel %vm746, %v632, 0.0
        %v763 = vsel %vm747, %v637, 0.0
        %v764 = vsel %vm748, %v640, 0.0
        %v765 = vsel %vm749, %v645, 0.0
        %v766 = vsel %vm750, %v648, 0.0
        %v767 = vld [vmem:[#allocation2] sm:$0x1]
        %v768 = vadd.f32 %v751, %v752
        %v769 = vadd.f32 %v768, %v753
        %v770 = vadd.f32 %v769, %v754
        %v771 = vadd.f32 %v770, %v755
        %v772 = vadd.f32 %v771, %v756
        %v773 = vadd.f32 %v772, %v757
        %v774 = vadd.f32 %v773, %v758
        %v775 = vadd.f32 %v774, %v759
        %v776 = vadd.f32 %v775, %v760
        %v777 = vadd.f32 %v776, %v761
        %v778 = vadd.f32 %v777, %v762
        %v779 = vadd.f32 %v778, %v763
        %v780 = vadd.f32 %v779, %v764
        %v781 = vadd.f32 %v780, %v765
        %v782 = vadd.f32 %v781, %v766
        %v783 = vrot.slane %v782, 4
        %v784 = vadd.f32 %v782, %v783
        %v785 = vrot.slane %v784, 2
        %v786 = vadd.f32 %v784, %v785
        %v787 = vrot.slane %v786, 1
        %v788 = vadd.f32 %v786, %v787
        %v789 = vadd.f32 %v767, %v788
        %790 = vst [vmem:[#allocation2] sm:$0x1] %v789
        %v791 = vld [vmem:[#allocation3] sm:$0x1]
        %v792 = vmul.f32 %v751, %v589
        %v793 = vmul.f32 %v752, %v592
        %v794 = vmul.f32 %v753, %v597
        %v795 = vmul.f32 %v754, %v600
        %v796 = vmul.f32 %v755, %v605
        %v797 = vmul.f32 %v756, %v608
        %v798 = vmul.f32 %v757, %v613
        %v799 = vmul.f32 %v758, %v616
        %v800 = vmul.f32 %v759, %v621
        %v801 = vmul.f32 %v760, %v624
        %v802 = vmul.f32 %v761, %v629
        %v803 = vmul.f32 %v762, %v632
        %v804 = vmul.f32 %v763, %v637
        %v805 = vmul.f32 %v764, %v640
        %v806 = vmul.f32 %v765, %v645
        %v807 = vmul.f32 %v766, %v648
        %v808 = vadd.f32 %v792, %v793
        %v809 = vadd.f32 %v808, %v794
        %v810 = vadd.f32 %v809, %v795
        %v811 = vadd.f32 %v810, %v796
        %v812 = vadd.f32 %v811, %v797
        %v813 = vadd.f32 %v812, %v798
        %v814 = vadd.f32 %v813, %v799
        %v815 = vadd.f32 %v814, %v800
        %v816 = vadd.f32 %v815, %v801
        %v817 = vadd.f32 %v816, %v802
        %v818 = vadd.f32 %v817, %v803
        %v819 = vadd.f32 %v818, %v804
        %v820 = vadd.f32 %v819, %v805
        %v821 = vadd.f32 %v820, %v806
        %v822 = vadd.f32 %v821, %v807
        %v823 = vrot.slane %v822, 4
        %v824 = vadd.f32 %v822, %v823
        %v825 = vrot.slane %v824, 2
        %v826 = vadd.f32 %v824, %v825
        %v827 = vrot.slane %v826, 1
        %v828 = vadd.f32 %v826, %v827
        %v829 = vadd.f32 %v791, %v828
        %830 = vst [vmem:[#allocation3] sm:$0x1] %v829
        %p831 = scmp.eq.s32.totalorder %s24, 1
        // Predicated region
        $region45: #{tpu_custom_call.1} parent=39 // pred_check
          %p832 = pneg %p831
        $region46: #{tpu_custom_call.1} parent=39 // pred_check_branch
          %834 = sbr.rel (%p832) target = $region48
        $region47: #{tpu_custom_call.1} parent=39 // pred_region
          %v835 = vlaneseq
          %v836 = vand.u32 %v835, 127
          %vm837 = vcmp.lt.s32.totalorder %v836, 32
          %v838 = vld [vmem:[#allocation2] sm:$0x1]
          %v839 = vmul.f32 %v838, 0.004
          %v840 = vld [vmem:[#allocation3] sm:$0x1]
          %v841 = vmul.f32 %v839, 250.0
          %v842 = vmul.f32 %v841, %v839
          %v843 = vsub.f32 %v840, %v842
          %v844 = vrcp.pop 249.0
          %v845 = vmul.f32 %v843, %v844
          %v846 = vmax.f32 %v845, 0.0
          %v847 = vrsqrt.pop %v846
          %v848 = vsel %vm837, %v847, 0.0
          %v849 = vld [vmem:[%s240] sm:$0xff]
          %v850 = vld [vmem:[%s240 + $0x8] sm:$0xff]
          %v851 = vld [vmem:[%s240 + $0x10] sm:$0xff]
          %v852 = vld [vmem:[%s240 + $0x18] sm:$0xff]
          %v853 = vld [vmem:[%s240 + $0x20] sm:$0xff]
          %v854 = vld [vmem:[%s240 + $0x28] sm:$0xff]
          %v855 = vld [vmem:[%s240 + $0x30] sm:$0xff]
          %v856 = vld [vmem:[%s240 + $0x38] sm:$0xff]
          %v857 = vld [vmem:[%s240 + $0x40] sm:$0xff]
          %v858 = vld [vmem:[%s240 + $0x48] sm:$0xff]
          %v859 = vld [vmem:[%s240 + $0x50] sm:$0xff]
          %v860 = vld [vmem:[%s240 + $0x58] sm:$0xff]
          %v861 = vld [vmem:[%s240 + $0x60] sm:$0xff]
          %v862 = vld [vmem:[%s240 + $0x68] sm:$0xff]
          %v863 = vld [vmem:[%s240 + $0x70] sm:$0xff]
          %v864 = vld [vmem:[%s240 + $0x78] sm:$0xff]
          %v865 = vld [vmem:[%s240 + $0x80] sm:$0xff]
          %v866 = vld [vmem:[%s240 + $0x88] sm:$0xff]
          %v867 = vld [vmem:[%s240 + $0x90] sm:$0xff]
          %v868 = vld [vmem:[%s240 + $0x98] sm:$0xff]
          %v869 = vld [vmem:[%s240 + $0xa0] sm:$0xff]
          %v870 = vld [vmem:[%s240 + $0xa8] sm:$0xff]
          %v871 = vld [vmem:[%s240 + $0xb0] sm:$0xff]
          %v872 = vld [vmem:[%s240 + $0xb8] sm:$0xff]
          %v873 = vld [vmem:[%s240 + $0xc0] sm:$0xff]
          %v874 = vld [vmem:[%s240 + $0xc8] sm:$0xff]
          %v875 = vld [vmem:[%s240 + $0xd0] sm:$0xff]
          %v876 = vld [vmem:[%s240 + $0xd8] sm:$0xff]
          %v877 = vld [vmem:[%s240 + $0xe0] sm:$0xff]
          %v878 = vld [vmem:[%s240 + $0xe8] sm:$0xff]
          %v879 = vld [vmem:[%s240 + $0xf0] sm:$0xff]
          %v880 = vld [vmem:[%s240 + $0xf8] sm:$0xff]
          %v882 = vlaneseq
          %v883 = vshrl.u32 %v882, 7
          %v884 = vsub.s32 0, %v883
          %v885 = vrot.slane %v839, %v884
          %v887 = vsub.f32 %v849, %v885
          %v888 = vsub.f32 %v850, %v885
          %v889 = vsub.f32 %v851, %v885
          %v890 = vsub.f32 %v852, %v885
          %v891 = vsub.f32 %v853, %v885
          %v892 = vsub.f32 %v854, %v885
          %v893 = vsub.f32 %v855, %v885
          %v894 = vsub.f32 %v856, %v885
          %v895 = vsub.f32 %v857, %v885
          %v896 = vsub.f32 %v858, %v885
          %v897 = vsub.f32 %v859, %v885
          %v898 = vsub.f32 %v860, %v885
          %v899 = vsub.f32 %v861, %v885
          %v900 = vsub.f32 %v862, %v885
          %v901 = vsub.f32 %v863, %v885
          %v902 = vsub.f32 %v864, %v885
          %v903 = vsub.f32 %v865, %v885
          %v904 = vsub.f32 %v866, %v885
          %v905 = vsub.f32 %v867, %v885
          %v906 = vsub.f32 %v868, %v885
          %v907 = vsub.f32 %v869, %v885
          %v908 = vsub.f32 %v870, %v885
          %v909 = vsub.f32 %v871, %v885
          %v910 = vsub.f32 %v872, %v885
          %v911 = vsub.f32 %v873, %v885
          %v912 = vsub.f32 %v874, %v885
          %v913 = vsub.f32 %v875, %v885
          %v914 = vsub.f32 %v876, %v885
          %v915 = vsub.f32 %v877, %v885
          %v916 = vsub.f32 %v878, %v885
          %v917 = vsub.f32 %v879, %v885
          %v918 = vsub.f32 %v880, %v885
          %v919 = vlaneseq
          %v920 = vshrl.u32 %v919, 7
          %v921 = vsub.s32 0, %v920
          %v922 = vrot.slane %v848, %v921
          %v923 = vmul.f32 %v887, %v922
          %v924 = vmul.f32 %v888, %v922
          %v925 = vmul.f32 %v889, %v922
          %v926 = vmul.f32 %v890, %v922
          %v927 = vmul.f32 %v891, %v922
          %v928 = vmul.f32 %v892, %v922
          %v929 = vmul.f32 %v893, %v922
          %v930 = vmul.f32 %v894, %v922
          %v931 = vmul.f32 %v895, %v922
          %v932 = vmul.f32 %v896, %v922
          %v933 = vmul.f32 %v897, %v922
          %v934 = vmul.f32 %v898, %v922
          %v935 = vmul.f32 %v899, %v922
          %v936 = vmul.f32 %v900, %v922
          %v937 = vmul.f32 %v901, %v922
          %v938 = vmul.f32 %v902, %v922
          %v939 = vmul.f32 %v903, %v922
          %v940 = vmul.f32 %v904, %v922
          %v941 = vmul.f32 %v905, %v922
          %v942 = vmul.f32 %v906, %v922
          %v943 = vmul.f32 %v907, %v922
          %v944 = vmul.f32 %v908, %v922
          %v945 = vmul.f32 %v909, %v922
          %v946 = vmul.f32 %v910, %v922
          %v947 = vmul.f32 %v911, %v922
          %v948 = vmul.f32 %v912, %v922
          %v949 = vmul.f32 %v913, %v922
          %v950 = vmul.f32 %v914, %v922
          %v951 = vmul.f32 %v915, %v922
          %v952 = vmul.f32 %v916, %v922
          %v953 = vmul.f32 %v917, %v922
          %v954 = vmul.f32 %v918, %v922
          %955 = vst [vmem:[%s240] sm:$0xff] %v923
          %956 = vst [vmem:[%s240 + $0x8] sm:$0xff] %v924
          %957 = vst [vmem:[%s240 + $0x10] sm:$0xff] %v925
          %958 = vst [vmem:[%s240 + $0x18] sm:$0xff] %v926
          %959 = vst [vmem:[%s240 + $0x20] sm:$0xff] %v927
          %960 = vst [vmem:[%s240 + $0x28] sm:$0xff] %v928
          %961 = vst [vmem:[%s240 + $0x30] sm:$0xff] %v929
          %962 = vst [vmem:[%s240 + $0x38] sm:$0xff] %v930
          %963 = vst [vmem:[%s240 + $0x40] sm:$0xff] %v931
          %964 = vst [vmem:[%s240 + $0x48] sm:$0xff] %v932
          %965 = vst [vmem:[%s240 + $0x50] sm:$0xff] %v933
          %966 = vst [vmem:[%s240 + $0x58] sm:$0xff] %v934
          %967 = vst [vmem:[%s240 + $0x60] sm:$0xff] %v935
          %968 = vst [vmem:[%s240 + $0x68] sm:$0xff] %v936
          %969 = vst [vmem:[%s240 + $0x70] sm:$0xff] %v937
          %970 = vst [vmem:[%s240 + $0x78] sm:$0xff] %v938
          %971 = vst [vmem:[%s240 + $0x80] sm:$0xff] %v939
          %972 = vst [vmem:[%s240 + $0x88] sm:$0xff] %v940
          %973 = vst [vmem:[%s240 + $0x90] sm:$0xff] %v941
          %974 = vst [vmem:[%s240 + $0x98] sm:$0xff] %v942
          %975 = vst [vmem:[%s240 + $0xa0] sm:$0xff] %v943
          %976 = vst [vmem:[%s240 + $0xa8] sm:$0xff] %v944
          %977 = vst [vmem:[%s240 + $0xb0] sm:$0xff] %v945
          %978 = vst [vmem:[%s240 + $0xb8] sm:$0xff] %v946
          %979 = vst [vmem:[%s240 + $0xc0] sm:$0xff] %v947
          %980 = vst [vmem:[%s240 + $0xc8] sm:$0xff] %v948
          %981 = vst [vmem:[%s240 + $0xd0] sm:$0xff] %v949
          %982 = vst [vmem:[%s240 + $0xd8] sm:$0xff] %v950
          %983 = vst [vmem:[%s240 + $0xe0] sm:$0xff] %v951
          %984 = vst [vmem:[%s240 + $0xe8] sm:$0xff] %v952
          %985 = vst [vmem:[%s240 + $0xf0] sm:$0xff] %v953
          %986 = vst [vmem:[%s240 + $0xf8] sm:$0xff] %v954
        $region48: #{tpu_custom_call.1} parent=39 // pred_fallthru
          _
        %s987 = sand.u32 %s151, 1
        %s988 = scalar_lea.sflag [#allocation5], %s987
        %s989 = sand.u32 %s151, 1
        %s990 = smul.addr %s989, 256
        %s991 = scalar_lea.vmem [#allocation4], %s990
        // Predicated region
        $region49: #{tpu_custom_call.1} parent=39 // pred_check
          %p992 = pneg %p161
        $region50: #{tpu_custom_call.1} parent=39 // pred_check_branch
          %994 = sbr.rel (%p992) target = $region52
        $region51: #{tpu_custom_call.1} parent=39 // pred_region
          %s996 = ssub.s32 4096, 4096
          %997 = vsyncadd %s988, %s996
          %s998 = smul.addr %s23, 32
          %s999 = smul.addr %s998, 128
          %s1000 = scalar_lea.hbm %s5, %s999
          %s1001 = sshll.u32 %s991, 4
          %s1002 = int_to_ptr.vmem [resolvable:$true] %s1001
          %1007 = dma.vmem_to_hbm [thread:$0]  %s1002, 4096, %s1000, %s988, 128, 128, 8
        $region52: #{tpu_custom_call.1} parent=39 // pred_fallthru
          _
      $region40: #{tpu_custom_call.1} parent=5 // pred_fallthru
        _
      %p1008 = scmp.le.s32.totalorder 2, %s14
      // Predicated region
      $region53: #{tpu_custom_call.1} parent=5 // pred_check
        %p1009 = pneg %p1008
      $region54: #{tpu_custom_call.1} parent=5 // pred_check_branch
        %1011 = sbr.rel (%p1009) target = $region56
      $region55: #{tpu_custom_call.1} parent=5 // pred_region
        %s1012 = ssub.s32 %s14, 2
        // Predicated region
        $region57: #{tpu_custom_call.1} parent=55 // pred_check
          %p1013 = pneg %p167
        $region58: #{tpu_custom_call.1} parent=55 // pred_check_branch
          %1015 = sbr.rel (%p1013) target = $region60
        $region59: #{tpu_custom_call.1} parent=55 // pred_region
          %s1016 = sand.u32 %s152, 1
          %s1017 = scalar_lea.sflag [#allocation5], %s1016
          %s1018 = sand.u32 %s152, 1
          %s1019 = smul.addr %s1018, 256
          %s1020 = scalar_lea.vmem [#allocation4], %s1019
          %1021 = dma.done %s1017, 4096
        $region60: #{tpu_custom_call.1} parent=55 // pred_fallthru
          _
      $region56: #{tpu_custom_call.1} parent=5 // pred_fallthru
        _
    $region6: #{tpu_custom_call.1} parent=1 // loop_footer
      %s18 = sadd.s32 1, %s14
    $region7: #{tpu_custom_call.1} parent=1 // loop_footer_branch
      %13 = sbr.rel target = $region3
    $region8: #{tpu_custom_call.1} parent=1 // loop_exit
      _
    %1022 = vsyncpa [#allocation5], 1
    %s1023 = scalar_lea.sflag [#allocation5], 1
    %1024 = vsyncpa %s1023, 1

</llo_original>
